<compile_context>
chip_gen: v7x
topology: tpu7x:2x2x1
jax: 0.10.0
libtpu: 0.0.40
codegen_flags: <defaults>
</compile_context>

<pallas_src>
import jax
import jax.numpy as jnp
from jax.experimental import pallas as pl
from jax.experimental.pallas import tpu as pltpu


def _sigmoid_eup(h):
    # sigmoid(h) == 0.5 * tanh(0.5 * h) + 0.5  -> single EUP transcendental, VALU stays free.
    return 0.5 * jnp.tanh(0.5 * h) + 0.5


def _mlp_sig_kernel_q1(x_ref, w1_ref, b1_ref, w2_row_ref, b2_ref, o_ref):
    # Layer 1: (TM, p) @ (p, k) + (1, k)   -- MXU
    h = jnp.dot(x_ref[...], w1_ref[...], preferred_element_type=jnp.float32)
    h = h + b1_ref[...]
    h = _sigmoid_eup(h)
    # Layer 2 (q == 1): VPU multiply + lane reduce; avoids a nearly-empty MXU pass.
    # w2_row_ref is (1, k); broadcast-multiply then reduce over the lane axis.
    out = jnp.sum(h * w2_row_ref[...], axis=-1, keepdims=True) + b2_ref[...]
    o_ref[...] = out.astype(o_ref.dtype)


def _mlp_sig_kernel(x_ref, w1_ref, b1_ref, w2_ref, b2_ref, o_ref):
    # General-q path: two MXU matmuls.
    h = jnp.dot(x_ref[...], w1_ref[...], preferred_element_type=jnp.float32)
    h = h + b1_ref[...]
    h = _sigmoid_eup(h)
    out = jnp.dot(h, w2_ref[...], preferred_element_type=jnp.float32) + b2_ref[...]
    o_ref[...] = out.astype(o_ref.dtype)


def netp_sig_forward(x, w1, b1, w2, b2, *, block_rows=512):
    """x: (N, p) f32; w1: (p, k); b1: (k,); w2: (k, q); b2: (q,). Returns (N, q) f32."""
    N, p = x.shape
    k = w1.shape[1]
    q = w2.shape[1]

    # --- pick the batch tile -------------------------------------------------
    # Biggest tile that fits comfortably: 2 x-buffers (TM*p*4B) + 2 out-buffers
    # (TM*q*4B) + resident weights + the (TM,k) f32 intermediate.  block_rows=512
    # is far under v7x's ~32 MiB scoped VMEM for moderate p/k; re-derive for huge p.
    tm = min(block_rows, N)
    if tm != N:
        tm = max(8, (tm // 8) * 8)  # sublane rule: tile rows must be a multiple of 8
    n_pad = pl.cdiv(N, tm) * tm
    if n_pad != N:
        x = jnp.pad(x, ((0, n_pad - N), (0, 0)))
    grid = (n_pad // tm,)

    b1_2d = b1.reshape(1, k)
    b2_2d = b2.reshape(1, q)

    if q == 1:
        kernel = _mlp_sig_kernel_q1
        w2_arg = w2.reshape(1, k)  # (k,1) -> (1,k) row layout (wrapper-side, free)
        w2_spec = pl.BlockSpec((1, k), lambda i: (0, 0))
    else:
        kernel = _mlp_sig_kernel
        w2_arg = w2
        w2_spec = pl.BlockSpec((k, q), lambda i: (0, 0))

    # TODO(synk): for very large N a lane-dense transposed orientation ((q, N) output)
    # would avoid masked q=1 stores; kept natural layout here for clarity.
    out = pl.pallas_call(
        kernel,
        out_shape=jax.ShapeDtypeStruct((n_pad, q), jnp.float32),
        grid=grid,
        in_specs=[
            pl.BlockSpec((tm, p), lambda i: (i, 0)),   # x: streamed per grid step
            pl.BlockSpec((p, k), lambda i: (0, 0)),    # w1: resident
            pl.BlockSpec((1, k), lambda i: (0, 0)),    # b1: resident
            w2_spec,                                   # w2: resident
            pl.BlockSpec((1, q), lambda i: (0, 0)),    # b2: resident
        ],
        out_specs=pl.BlockSpec((tm, q), lambda i: (i, 0)),
        compiler_params=pltpu.CompilerParams(
            dimension_semantics=("parallel",),         # megacore-shard the batch axis
        ),
    )(x, w1, b1_2d, w2_arg, b2_2d)

    return out[:N]


def init_params(key, p, k=50, q=1):
    """Deterministic init mimicking torch.nn.Linear default (U(-1/sqrt(fan_in), 1/sqrt(fan_in)))."""
    k1, k2, k3, k4 = jax.random.split(key, 4)
    bound1 = 1.0 / jnp.sqrt(p)
    bound2 = 1.0 / jnp.sqrt(k)
    # Stored already transposed relative to torch's (out, in) layout: (in, out).
    w1 = jax.random.uniform(k1, (p, k), jnp.float32, -bound1, bound1)
    b1 = jax.random.uniform(k2, (k,), jnp.float32, -bound1, bound1)
    w2 = jax.random.uniform(k3, (k, q), jnp.float32, -bound2, bound2)
    b2 = jax.random.uniform(k4, (q,), jnp.float32, -bound2, bound2)
    return w1, b1, w2, b2


def _reference(x, w1, b1, w2, b2):
    return jax.nn.sigmoid(x @ w1 + b1) @ w2 + b2


if __name__ == "__main__":
    key = jax.random.PRNGKey(0)
    kx, kp, kx2 = jax.random.split(key, 3)

    # Small shapes consistent with the module: x (N, p), Linear(p,50) -> Linear(50,1).
    N, p, k, q = 8, 32, 50, 1
    x = jax.random.normal(kx, (N, p), jnp.float32)
    w1, b1, w2, b2 = init_params(kp, p, k, q)

    out = netp_sig_forward(x, w1, b1, w2, b2)
    out = jax.block_until_ready(out)
    ref = _reference(x, w1, b1, w2, b2)
    assert out.shape == (N, q)
    assert jnp.allclose(out, ref, atol=1e-5, rtol=1e-5)

    # Exercise the gridded / padded path too (grid > 1, tail padding).
    N2 = 20
    x2 = jax.random.normal(kx2, (N2, p), jnp.float32)
    out2 = jax.block_until_ready(netp_sig_forward(x2, w1, b1, w2, b2, block_rows=8))
    ref2 = _reference(x2, w1, b1, w2, b2)
    assert out2.shape == (N2, q)
    assert jnp.allclose(out2, ref2, atol=1e-5, rtol=1e-5)

    print("KERNEL_OK")
</pallas_src>

<mosaic_0001>
module attributes {stable_mosaic.version = 11 : i64} {
  func.func @_mlp_sig_kernel_q1(%arg0: i32, %arg1: memref<8x32xf32, #tpu.memory_space<vmem>>, %arg2: memref<32x50xf32, #tpu.memory_space<vmem>>, %arg3: memref<1x50xf32, #tpu.memory_space<vmem>>, %arg4: memref<1x50xf32, #tpu.memory_space<vmem>>, %arg5: memref<1x1xf32, #tpu.memory_space<vmem>>, %arg6: memref<8x1xf32, #tpu.memory_space<vmem>>) attributes {dimension_semantics = [#tpu.dimension_semantics<parallel>], iteration_bounds = array<i64: 1>, scalar_prefetch = 0 : i64, scratch_operands = 0 : i64, tpu.core_type = #tpu.core_type<tc>, window_params = [{transform_indices = @transform_0, window_bounds = array<i64: 8, 32>}, {pipeline_mode = #tpu.pipeline_mode<synchronous>, transform_indices = @transform_1, window_bounds = array<i64: 32, 50>}, {pipeline_mode = #tpu.pipeline_mode<synchronous>, transform_indices = @transform_2, window_bounds = array<i64: 1, 50>}, {pipeline_mode = #tpu.pipeline_mode<synchronous>, transform_indices = @transform_3, window_bounds = array<i64: 1, 50>}, {pipeline_mode = #tpu.pipeline_mode<synchronous>, transform_indices = @transform_4, window_bounds = array<i64: 1, 1>}, {transform_indices = @transform_5, window_bounds = array<i64: 8, 1>}]} {
    %c0 = arith.constant 0 : index
    %c0_0 = arith.constant 0 : index
    %0 = vector.load %arg1[%c0, %c0_0] : memref<8x32xf32, #tpu.memory_space<vmem>>, vector<8x32xf32>
    %c0_1 = arith.constant 0 : index
    %c0_2 = arith.constant 0 : index
    %1 = vector.load %arg2[%c0_1, %c0_2] : memref<32x50xf32, #tpu.memory_space<vmem>>, vector<32x50xf32>
    %cst = arith.constant dense<0.000000e+00> : vector<8x50xf32>
    %2 = tpu.matmul %0, %1, %cst {dimension_numbers = #tpu.dot_dimension_numbers<[1], [0], [0], [1], [0, 0, 1, 1], [], []>} : vector<8x32xf32>, vector<32x50xf32>, vector<8x50xf32> -> vector<8x50xf32>
    %c0_3 = arith.constant 0 : index
    %c0_4 = arith.constant 0 : index
    %3 = vector.load %arg3[%c0_3, %c0_4] : memref<1x50xf32, #tpu.memory_space<vmem>>, vector<1x50xf32>
    %4 = vector.broadcast %3 : vector<1x50xf32> to vector<8x50xf32>
    %5 = arith.addf %2, %4 : vector<8x50xf32>
    %cst_5 = arith.constant 5.000000e-01 : f32
    %6 = vector.broadcast %cst_5 : f32 to vector<8x50xf32>
    %7 = arith.mulf %6, %5 : vector<8x50xf32>
    %8 = math.tanh %7 : vector<8x50xf32>
    %cst_6 = arith.constant 5.000000e-01 : f32
    %9 = vector.broadcast %cst_6 : f32 to vector<8x50xf32>
    %10 = arith.mulf %9, %8 : vector<8x50xf32>
    %cst_7 = arith.constant 5.000000e-01 : f32
    %11 = vector.broadcast %cst_7 : f32 to vector<8x50xf32>
    %12 = arith.addf %10, %11 : vector<8x50xf32>
    %c0_8 = arith.constant 0 : index
    %c0_9 = arith.constant 0 : index
    %13 = vector.load %arg4[%c0_8, %c0_9] : memref<1x50xf32, #tpu.memory_space<vmem>>, vector<1x50xf32>
    %14 = vector.broadcast %13 : vector<1x50xf32> to vector<8x50xf32>
    %15 = arith.mulf %12, %14 : vector<8x50xf32>
    %cst_10 = arith.constant dense<0.000000e+00> : vector<8xf32>
    %16 = vector.multi_reduction <add>, %15, %cst_10 [1] : vector<8x50xf32> to vector<8xf32>
    %17 = vector.shape_cast %16 : vector<8xf32> to vector<8x1xf32>
    %c0_11 = arith.constant 0 : index
    %c0_12 = arith.constant 0 : index
    %18 = vector.load %arg5[%c0_11, %c0_12] : memref<1x1xf32, #tpu.memory_space<vmem>>, vector<1x1xf32>
    %19 = vector.broadcast %18 : vector<1x1xf32> to vector<8x1xf32>
    %20 = arith.addf %17, %19 : vector<8x1xf32>
    %c0_13 = arith.constant 0 : index
    %c0_14 = arith.constant 0 : index
    %21 = vector.load %arg6[%c0_13, %c0_14] : memref<8x1xf32, #tpu.memory_space<vmem>>, vector<8x1xf32>
    tpu.vector_store %arg6[%c0_13, %c0_14], %20 {strides = array<i32>} : memref<8x1xf32, #tpu.memory_space<vmem>>, vector<8x1xf32>,
    return
  }
  func.func @transform_0(%arg0: i32) -> (i32, i32) {
    %c0_i32 = arith.constant 0 : i32
    %c0_i32_0 = arith.constant 0 : i32
    return %arg0, %c0_i32 : i32, i32
  }
  func.func @transform_1(%arg0: i32) -> (i32, i32) {
    %c0_i32 = arith.constant 0 : i32
    %c0_i32_0 = arith.constant 0 : i32
    %c0_i32_1 = arith.constant 0 : i32
    return %c0_i32, %c0_i32_0 : i32, i32
  }
  func.func @transform_2(%arg0: i32) -> (i32, i32) {
    %c0_i32 = arith.constant 0 : i32
    %c0_i32_0 = arith.constant 0 : i32
    %c0_i32_1 = arith.constant 0 : i32
    return %c0_i32, %c0_i32_0 : i32, i32
  }
  func.func @transform_3(%arg0: i32) -> (i32, i32) {
    %c0_i32 = arith.constant 0 : i32
    %c0_i32_0 = arith.constant 0 : i32
    %c0_i32_1 = arith.constant 0 : i32
    return %c0_i32, %c0_i32_0 : i32, i32
  }
  func.func @transform_4(%arg0: i32) -> (i32, i32) {
    %c0_i32 = arith.constant 0 : i32
    %c0_i32_0 = arith.constant 0 : i32
    %c0_i32_1 = arith.constant 0 : i32
    return %c0_i32, %c0_i32_0 : i32, i32
  }
  func.func @transform_5(%arg0: i32) -> (i32, i32) {
    %c0_i32 = arith.constant 0 : i32
    %c0_i32_0 = arith.constant 0 : i32
    return %arg0, %c0_i32 : i32, i32
  }
}

</mosaic_0001>

<llo_original>
// kernel: tpu_custom_call.1
$region0: #{tpu_custom_call.1}
  #allocation0 [shape = 'u32[]', space=smem, size = 0x4, offset = 0x4, fixed_abs, tag = 'smem constant byte address 0x4 - core index']
  #allocation1 [shape = 'u32[144,128]{1,0:T(1,128)}', space=vmem, size = 0x12000, scoped, tag = 'internal scratch']
  #allocation2 [shape = 'f32[1,1]{1,0:T(1,128)S(1)}', space=vmem, size = 0x200, scoped, tag = 'scoped memory for tpu_custom_call.1']
  %s0 = inlined_call_operand.hbm [shape: f32[8,32], index: 0, kind: input, shape index: {}]
  %s1 = inlined_call_operand.hbm [shape: f32[32,50], index: 1, kind: input, shape index: {}]
  %s2 = inlined_call_operand.vmem [shape: f32[1,50], index: 2, kind: input, shape index: {}]
  %s3 = inlined_call_operand.vmem [shape: f32[1,50], index: 3, kind: input, shape index: {}]
  %s4 = inlined_call_operand.<no memory space> [shape: f32[1,1], index: 4, kind: input, shape index: {}]
  %s5 = inlined_call_operand.vmem [shape: f32[8,1], index: 5, kind: output, shape index: {}]
  %s6 = sld [smem:[#allocation0]]
  $region38: #{tpu_custom_call.1} parent=0
    _
  %s8 = ssub.s32 1, %s6
  %s9 = scalar_select 0, %s8, %s6
  %v10 = vstv %s4
  %11 = vst [vmem:[#allocation2] sm:$0x1] %v10
  $region1: #{tpu_custom_call.1} parent=0
    #allocation3 [shape = 'u8[4096]{0}', space=vmem, size = 0x1000, scoped, tag = 'input window, operand 0, single buffered']
    #allocation4 [shape = 's32[1]{0}', space=sflag, size = 0x4, scoped, tag = 'scoped memory for tpu_custom_call.1']
    #allocation5 [shape = 'u8[16384]{0}', space=vmem, size = 0x4000, scoped, tag = 'input window, operand 1, single buffered']
    #allocation6 [shape = 's32[1]{0}', space=sflag, size = 0x4, scoped, tag = 'scoped memory for tpu_custom_call.1']
    %12 = vsyncpa [#allocation4], 0
    %13 = vsyncpa [#allocation6], 0
    // Predicated region
    $region2: #{tpu_custom_call.1} parent=1 // pred_check
      _
    $region3: #{tpu_custom_call.1} parent=1 // pred_check_branch
      %15 = sbr.rel (0) target = $region5
    $region4: #{tpu_custom_call.1} parent=1 // pred_region
      %s17 = ssub.s32 128, 128
      %18 = vsyncadd [#allocation4], %s17
      %s20 = sshll.u32 [#allocation3], 4
      %s21 = int_to_ptr.vmem [resolvable:$true] %s20
      %23 = dma.hbm_to_vmem [thread:$0]  %s0, 128, %s21, [#allocation4]
    $region5: #{tpu_custom_call.1} parent=1 // pred_fallthru
      _
    // Predicated region
    $region6: #{tpu_custom_call.1} parent=1 // pred_check
      _
    $region7: #{tpu_custom_call.1} parent=1 // pred_check_branch
      %25 = sbr.rel (0) target = $region9
    $region8: #{tpu_custom_call.1} parent=1 // pred_region
      %s27 = ssub.s32 512, 512
      %28 = vsyncadd [#allocation6], %s27
      %s29 = sshll.u32 [#allocation5], 4
      %s30 = int_to_ptr.vmem [resolvable:$true] %s29
      %35 = dma.hbm_to_vmem [thread:$0]  %s1, 512, %s30, [#allocation6], 128, 128, 8
    $region9: #{tpu_custom_call.1} parent=1 // pred_fallthru
      _
    // Predicated region
    $region10: #{tpu_custom_call.1} parent=1 // pred_check
      _
    $region11: #{tpu_custom_call.1} parent=1 // pred_check_branch
      %37 = sbr.rel (0) target = $region13
    $region12: #{tpu_custom_call.1} parent=1 // pred_region
      _
    $region13: #{tpu_custom_call.1} parent=1 // pred_fallthru
      _
    // Predicated region
    $region14: #{tpu_custom_call.1} parent=1 // pred_check
      _
    $region15: #{tpu_custom_call.1} parent=1 // pred_check_branch
      %39 = sbr.rel (0) target = $region17
    $region16: #{tpu_custom_call.1} parent=1 // pred_region
      _
    $region17: #{tpu_custom_call.1} parent=1 // pred_fallthru
      _
    // Predicated region
    $region18: #{tpu_custom_call.1} parent=1 // pred_check
      _
    $region19: #{tpu_custom_call.1} parent=1 // pred_check_branch
      %41 = sbr.rel (0) target = $region21
    $region20: #{tpu_custom_call.1} parent=1 // pred_region
      _
    $region21: #{tpu_custom_call.1} parent=1 // pred_fallthru
      _
    // Predicated region
    $region22: #{tpu_custom_call.1} parent=1 // pred_check
      _
    $region23: #{tpu_custom_call.1} parent=1 // pred_check_branch
      %43 = sbr.rel (0) target = $region25
    $region24: #{tpu_custom_call.1} parent=1 // pred_region
      %44 = dma.done [#allocation4], 128
    $region25: #{tpu_custom_call.1} parent=1 // pred_fallthru
      _
    // Predicated region
    $region26: #{tpu_custom_call.1} parent=1 // pred_check
      _
    $region27: #{tpu_custom_call.1} parent=1 // pred_check_branch
      %46 = sbr.rel (0) target = $region29
    $region28: #{tpu_custom_call.1} parent=1 // pred_region
      %47 = dma.done [#allocation6], 512
    $region29: #{tpu_custom_call.1} parent=1 // pred_fallthru
      _
    %v48 = vld [vmem:[#allocation3] sm:$0xff]
    %v49 = vld [vmem:[#allocation5] sm:$0xff]
    %v50 = vld [vmem:[#allocation5 + $0x8] sm:$0xff]
    %v51 = vld [vmem:[#allocation5 + $0x10] sm:$0xff]
    %v52 = vld [vmem:[#allocation5 + $0x18] sm:$0xff]
    %v53 = vld [vmem:[%s2] sm:$0x1]
    %v55 = vlaneseq
    %v56 = vshrl.u32 %v55, 7
    %v57 = vsub.s32 0, %v56
    %v58 = vrot.slane %v53, %v57
    %vm60 = vcmask 261120
    %v62 = vsel %vm60, %v48, 0
    %64 = vmatprep.subr.mxu0 0.0
    %65 = vmatpush1.msra.mxu0 %v49
    %66 = vmatprep.subr.mxu0 0.0
    %67 = vmatpush1.msra.mxu0 %v50
    %68 = vmatprep.subr.mxu0 0.0
    %69 = vmatpush1.msra.mxu0 %v51
    %70 = vmatprep.subr.mxu0 0.0
    %71 = vmatpush1.msra.mxu0 %v52
    %72 = vmatprep.subr.mxu0 0.0
    %73 = vmatpush1.msra.mxu0 0.0
    %74 = vmatprep.subr.mxu0 0.0
    %75 = vmatpush1.msra.mxu0 0.0
    %76 = vmatprep.subr.mxu0 0.0
    %77 = vmatpush1.msra.mxu0 0.0
    %78 = vmatprep.subr.mxu0 0.0
    %79 = vmatpush1.msra.mxu0 0.0
    %80 = vmatprep.subr.mxu0 0.0
    %81 = vmatpush1.msra.mxu0 0.0
    %82 = vmatprep.subr.mxu0 0.0
    %83 = vmatpush1.msra.mxu0 0.0
    %84 = vmatprep.subr.mxu0 0.0
    %85 = vmatpush1.msra.mxu0 0.0
    %86 = vmatprep.subr.mxu0 0.0
    %87 = vmatpush1.msra.mxu0 0.0
    %88 = vmatprep.subr.mxu0 0.0
    %89 = vmatpush1.msra.mxu0 0.0
    %90 = vmatprep.subr.mxu0 0.0
    %91 = vmatpush1.msra.mxu0 0.0
    %92 = vmatprep.subr.mxu0 0.0
    %93 = vmatpush1.msra.mxu0 0.0
    %94 = vmatprep.subr.mxu0 0.0
    %95 = vmatpush1.msra.mxu0 0.0
    %96 = vmatprep.subr.mxu0 0.0
    %97 = vmatpush1.msra.mxu0 0.0
    %98 = vmatprep.subr.mxu0 0.0
    %99 = vmatpush1.msra.mxu0 0.0
    %100 = vmatprep.subr.mxu0 0.0
    %101 = vmatpush1.msra.mxu0 0.0
    %102 = vmatprep.subr.mxu0 0.0
    %103 = vmatpush1.msra.mxu0 0.0
    %104 = vmatprep.subr.mxu0 0.0
    %105 = vmatpush1.msra.mxu0 0.0
    %106 = vmatprep.subr.mxu0 0.0
    %107 = vmatpush1.msra.mxu0 0.0
    %108 = vmatprep.subr.mxu0 0.0
    %109 = vmatpush1.msra.mxu0 0.0
    %110 = vmatprep.subr.mxu0 0.0
    %111 = vmatpush1.msra.mxu0 0.0
    %112 = vmatprep.subr.mxu0 0.0
    %113 = vmatpush1.msra.mxu0 0.0
    %114 = vmatprep.subr.mxu0 0.0
    %115 = vmatpush1.msra.mxu0 0.0
    %116 = vmatprep.subr.mxu0 0.0
    %117 = vmatpush1.msra.mxu0 0.0
    %118 = vmatprep.subr.mxu0 0.0
    %119 = vmatpush1.msra.mxu0 0.0
    %120 = vmatprep.subr.mxu0 0.0
    %121 = vmatpush1.msra.mxu0 0.0
    %122 = vmatprep.subr.mxu0 0.0
    %123 = vmatpush1.msra.mxu0 0.0
    %124 = vmatprep.subr.mxu0 0.0
    %125 = vmatpush1.msra.mxu0 0.0
    %126 = vmatprep.subr.mxu0 0.0
    %127 = vmatpush1.msra.mxu0 0.0
    %128 = vmatprep.mubr.f32.mxu0 0.0
    %129 = vmatmul.mubr.f32.gmra.mrb[0].mxu0 %v62
    %v130 = vpop.f32.mrb[0].mxu0
    %v131 = vadd.f32 %v58, %v130
    %v132 = vpop.f32.mrb[0].mxu0
    %133 = vdwg.mxu0
    %v134 = vmul.f32 %v131, 0.5
    %v135 = vtanh.pop %v134
    %v136 = vmul.f32 %v135, 0.5
    %v137 = vadd.f32 %v136, 0.5
    %v138 = vld [vmem:[%s3] sm:$0x1]
    %v140 = vlaneseq
    %v141 = vshrl.u32 %v140, 7
    %v142 = vsub.s32 0, %v141
    %v143 = vrot.slane %v138, %v142
    %v145 = vmul.f32 %v137, %v143
    %vm146 = vcmask 408576
    %v147 = vsel %vm146, %v145, 0.0
    %148 = vadd.xlane.f32.xlu0 %v147
    %v149 = vpop.xlane.xlu0 %148
    %v150 = vld [vmem:[#allocation2] sm:$0x1]
    %v152 = vlaneseq
    %v153 = vshrl.u32 %v152, 7
    %v154 = vsub.s32 0, %v153
    %v155 = vrot.slane %v150, %v154
    %v157 = vadd.f32 %v149, %v155
    %vm158 = vcmask 7168
    %159 = vst.msk [vmem:[%s5] sm:$0xff] %vm158, %v157
    // Predicated region
    $region30: #{tpu_custom_call.1} parent=1 // pred_check
      _
    $region31: #{tpu_custom_call.1} parent=1 // pred_check_branch
      %161 = sbr.rel (0) target = $region33
    $region32: #{tpu_custom_call.1} parent=1 // pred_region
      _
    $region33: #{tpu_custom_call.1} parent=1 // pred_fallthru
      _
    // Predicated region
    $region34: #{tpu_custom_call.1} parent=1 // pred_check
      _
    $region35: #{tpu_custom_call.1} parent=1 // pred_check_branch
      %163 = sbr.rel (0) target = $region37
    $region36: #{tpu_custom_call.1} parent=1 // pred_region
      _
    $region37: #{tpu_custom_call.1} parent=1 // pred_fallthru
      _
    %164 = vsyncpa [#allocation4], 1
    %165 = vsyncpa [#allocation6], 1

</llo_original>
